<compile_context>
chip_gen: v5e
topology: v5e:2x2
jax: 0.10.0
libtpu: 0.0.40
codegen_flags: <defaults>
</compile_context>

<pallas_src>
import jax
import jax.numpy as jnp
from jax.experimental import pallas as pl
from jax.experimental.pallas import tpu as pltpu


def _bcast_mul_kernel(scale_ref, x_ref, o_ref):
    # scale_ref: [R_blk, 1]; x_ref/o_ref: [R_blk, HW]
    # Per-row scale is lane-broadcast by the VPU multiply.
    o_ref[...] = scale_ref[...] * x_ref[...]


def _pick_row_block(rows, hw, itemsize):
    """Shape-gated row-block size.

    Small tensors (dispatch-bound) -> one full-array block (no grid overhead).
    Large tensors -> ~1 MiB input blocks, rows rounded to a multiple of 8,
    split as evenly as possible so pipelining / megacore sharding pay off.
    """
    total_bytes = 2 * rows * hw * itemsize  # input + output HBM traffic
    if total_bytes < (2 << 20) or rows <= 8:
        return rows  # single block; fits VMEM in one shot on all generations
    n_blocks = pl.cdiv(rows * hw * itemsize, 1 << 20)
    block_rows = ((pl.cdiv(rows, n_blocks) + 7) // 8) * 8
    return min(rows, max(8, block_rows))


def broadcast_mul(x404, x399):
    """x404: [N, C, 1, 1], x399: [N, C, H, W] -> [N, C, H, W]."""
    n, c, h, w = x399.shape
    assert x404.shape == (n, c, 1, 1)

    rows = n * c   # fold batch into the sublane (row) dimension
    hw = h * w     # flattened spatial along lanes

    scale_2d = x404.reshape(rows, 1)
    x_2d = x399.reshape(rows, hw)

    block_rows = _pick_row_block(rows, hw, x_2d.dtype.itemsize)
    grid = (pl.cdiv(rows, block_rows),)

    out_2d = pl.pallas_call(
        _bcast_mul_kernel,
        out_shape=jax.ShapeDtypeStruct((rows, hw), x399.dtype),
        grid_spec=pl.GridSpec(
            grid=grid,
            in_specs=[
                pl.BlockSpec((block_rows, 1), lambda i: (i, 0)),
                pl.BlockSpec((block_rows, hw), lambda i: (i, 0)),
            ],
            out_specs=pl.BlockSpec((block_rows, hw), lambda i: (i, 0)),
        ),
        compiler_params=pltpu.CompilerParams(
            # Row blocks are independent -> allow megacore sharding when grid > 1.
            dimension_semantics=("parallel",),
        ),
    )(scale_2d, x_2d)

    return out_2d.reshape(n, c, h, w)


if __name__ == "__main__":
    key = jax.random.PRNGKey(0)
    k1, k2 = jax.random.split(key)

    # Reference shapes from the module (small -> single-block path).
    x399 = jax.random.normal(k1, (1, 336, 14, 14), dtype=jnp.float32)
    x404 = jax.random.normal(k2, (1, 336, 1, 1), dtype=jnp.float32)

    out = broadcast_mul(x404, x399)
    jax.block_until_ready(out)
    ref = x404 * x399
    assert out.shape == (1, 336, 14, 14)
    assert jnp.allclose(out, ref, atol=1e-6, rtol=1e-6)

    # Also exercise the batched / tiled path (batch folded into rows, grid > 1).
    k3, k4 = jax.random.split(k2)
    xb = jax.random.normal(k3, (4, 336, 14, 14), dtype=jnp.float32)
    sb = jax.random.normal(k4, (4, 336, 1, 1), dtype=jnp.float32)
    outb = broadcast_mul(sb, xb)
    jax.block_until_ready(outb)
    assert outb.shape == (4, 336, 14, 14)
    assert jnp.allclose(outb, sb * xb, atol=1e-6, rtol=1e-6)

    print("KERNEL_OK")
</pallas_src>

<mosaic_0001>
module attributes {stable_mosaic.version = 11 : i64} {
  func.func @_bcast_mul_kernel(%arg0: i32, %arg1: memref<336x1xf32, #tpu.memory_space<vmem>>, %arg2: memref<336x196xf32, #tpu.memory_space<vmem>>, %arg3: memref<336x196xf32, #tpu.memory_space<vmem>>) attributes {dimension_semantics = [#tpu.dimension_semantics<parallel>], iteration_bounds = array<i64: 1>, scalar_prefetch = 0 : i64, scratch_operands = 0 : i64, tpu.core_type = #tpu.core_type<tc>, window_params = [{transform_indices = @transform_0, window_bounds = array<i64: 336, 1>}, {transform_indices = @transform_1, window_bounds = array<i64: 336, 196>}, {transform_indices = @transform_2, window_bounds = array<i64: 336, 196>}]} {
    %c0 = arith.constant 0 : index
    %c0_0 = arith.constant 0 : index
    %0 = vector.load %arg1[%c0, %c0_0] : memref<336x1xf32, #tpu.memory_space<vmem>>, vector<336x1xf32>
    %c0_1 = arith.constant 0 : index
    %c0_2 = arith.constant 0 : index
    %1 = vector.load %arg2[%c0_1, %c0_2] : memref<336x196xf32, #tpu.memory_space<vmem>>, vector<336x196xf32>
    %2 = vector.broadcast %0 : vector<336x1xf32> to vector<336x196xf32>
    %3 = arith.mulf %2, %1 : vector<336x196xf32>
    %c0_3 = arith.constant 0 : index
    %c0_4 = arith.constant 0 : index
    %4 = vector.load %arg3[%c0_3, %c0_4] : memref<336x196xf32, #tpu.memory_space<vmem>>, vector<336x196xf32>
    tpu.vector_store %arg3[%c0_3, %c0_4], %3 {strides = array<i32>} : memref<336x196xf32, #tpu.memory_space<vmem>>, vector<336x196xf32>,
    return
  }
  func.func @transform_0(%arg0: i32) -> (i32, i32) {
    %c0_i32 = arith.constant 0 : i32
    %c0_i32_0 = arith.constant 0 : i32
    return %arg0, %c0_i32 : i32, i32
  }
  func.func @transform_1(%arg0: i32) -> (i32, i32) {
    %c0_i32 = arith.constant 0 : i32
    %c0_i32_0 = arith.constant 0 : i32
    return %arg0, %c0_i32 : i32, i32
  }
  func.func @transform_2(%arg0: i32) -> (i32, i32) {
    %c0_i32 = arith.constant 0 : i32
    %c0_i32_0 = arith.constant 0 : i32
    return %arg0, %c0_i32 : i32, i32
  }
}

</mosaic_0001>

<llo_original>
// kernel: tpu_custom_call.1
$region0: #{tpu_custom_call.1}
  #allocation0 [shape = 'u32[]', space=smem, size = 0x4, offset = 0x4, fixed_abs, tag = 'smem constant byte address 0x4 - core index']
  #allocation1 [shape = 'u32[72,128]{1,0:T(1,128)}', space=vmem, size = 0x9000, scoped, tag = 'internal scratch']
  %s0 = inlined_call_operand.vmem [shape: f32[336,1], index: 0, kind: input, shape index: {}]
  %s1 = inlined_call_operand.vmem [shape: f32[336,196], index: 1, kind: input, shape index: {}]
  %s2 = inlined_call_operand.vmem [shape: f32[336,196], index: 2, kind: output, shape index: {}]
  %s3 = sld [smem:[#allocation0]]
  $region18: #{tpu_custom_call.1} parent=0
    _
  %s5 = ssub.s32 1, %s3
  %s6 = scalar_select 0, %s5, %s3
  // Predicated region
  $region2: #{tpu_custom_call.1} parent=0 // pred_check
    _
  $region3: #{tpu_custom_call.1} parent=0 // pred_check_branch
    %8 = sbr.rel (0) target = $region5
  $region4: #{tpu_custom_call.1} parent=0 // pred_region
    _
  $region5: #{tpu_custom_call.1} parent=0 // pred_fallthru
    _
  // Predicated region
  $region6: #{tpu_custom_call.1} parent=0 // pred_check
    _
  $region7: #{tpu_custom_call.1} parent=0 // pred_check_branch
    %10 = sbr.rel (0) target = $region9
  $region8: #{tpu_custom_call.1} parent=0 // pred_region
    _
  $region9: #{tpu_custom_call.1} parent=0 // pred_fallthru
    _
  %v11 = vld [vmem:[%s0] sm:$0xff]
  %v12 = vld [vmem:[%s0 + $0x8] sm:$0xff]
  %v13 = vld [vmem:[%s0 + $0x10] sm:$0xff]
  %v14 = vld [vmem:[%s0 + $0x18] sm:$0xff]
  %v15 = vld [vmem:[%s0 + $0x20] sm:$0xff]
  %v16 = vld [vmem:[%s0 + $0x28] sm:$0xff]
  %v17 = vld [vmem:[%s0 + $0x30] sm:$0xff]
  %v18 = vld [vmem:[%s0 + $0x38] sm:$0xff]
  %v19 = vld [vmem:[%s0 + $0x40] sm:$0xff]
  %v20 = vld [vmem:[%s0 + $0x48] sm:$0xff]
  %v21 = vld [vmem:[%s0 + $0x50] sm:$0xff]
  %v22 = vld [vmem:[%s0 + $0x58] sm:$0xff]
  %v23 = vld [vmem:[%s0 + $0x60] sm:$0xff]
  %v24 = vld [vmem:[%s0 + $0x68] sm:$0xff]
  %v25 = vld [vmem:[%s0 + $0x70] sm:$0xff]
  %v26 = vld [vmem:[%s0 + $0x78] sm:$0xff]
  %v27 = vld [vmem:[%s0 + $0x80] sm:$0xff]
  %v28 = vld [vmem:[%s0 + $0x88] sm:$0xff]
  %v29 = vld [vmem:[%s0 + $0x90] sm:$0xff]
  %v30 = vld [vmem:[%s0 + $0x98] sm:$0xff]
  %v31 = vld [vmem:[%s0 + $0xa0] sm:$0xff]
  %v32 = vld [vmem:[%s0 + $0xa8] sm:$0xff]
  %v33 = vld [vmem:[%s0 + $0xb0] sm:$0xff]
  %v34 = vld [vmem:[%s0 + $0xb8] sm:$0xff]
  %v35 = vld [vmem:[%s0 + $0xc0] sm:$0xff]
  %v36 = vld [vmem:[%s0 + $0xc8] sm:$0xff]
  %v37 = vld [vmem:[%s0 + $0xd0] sm:$0xff]
  %v38 = vld [vmem:[%s0 + $0xd8] sm:$0xff]
  %v39 = vld [vmem:[%s0 + $0xe0] sm:$0xff]
  %v40 = vld [vmem:[%s0 + $0xe8] sm:$0xff]
  %v41 = vld [vmem:[%s0 + $0xf0] sm:$0xff]
  %v42 = vld [vmem:[%s0 + $0xf8] sm:$0xff]
  %v43 = vld [vmem:[%s0 + $0x100] sm:$0xff]
  %v44 = vld [vmem:[%s0 + $0x108] sm:$0xff]
  %v45 = vld [vmem:[%s0 + $0x110] sm:$0xff]
  %v46 = vld [vmem:[%s0 + $0x118] sm:$0xff]
  %v47 = vld [vmem:[%s0 + $0x120] sm:$0xff]
  %v48 = vld [vmem:[%s0 + $0x128] sm:$0xff]
  %v49 = vld [vmem:[%s0 + $0x130] sm:$0xff]
  %v50 = vld [vmem:[%s0 + $0x138] sm:$0xff]
  %v51 = vld [vmem:[%s0 + $0x140] sm:$0xff]
  %v52 = vld [vmem:[%s0 + $0x148] sm:$0xff]
  %v53 = vld [vmem:[%s1] sm:$0xff]
  %v54 = vld [vmem:[%s1 + $0x8] sm:$0xff]
  %v55 = vld [vmem:[%s1 + $0x10] sm:$0xff]
  %v56 = vld [vmem:[%s1 + $0x18] sm:$0xff]
  %v57 = vld [vmem:[%s1 + $0x20] sm:$0xff]
  %v58 = vld [vmem:[%s1 + $0x28] sm:$0xff]
  %v59 = vld [vmem:[%s1 + $0x30] sm:$0xff]
  %v60 = vld [vmem:[%s1 + $0x38] sm:$0xff]
  %v61 = vld [vmem:[%s1 + $0x40] sm:$0xff]
  %v62 = vld [vmem:[%s1 + $0x48] sm:$0xff]
  %v63 = vld [vmem:[%s1 + $0x50] sm:$0xff]
  %v64 = vld [vmem:[%s1 + $0x58] sm:$0xff]
  %v65 = vld [vmem:[%s1 + $0x60] sm:$0xff]
  %v66 = vld [vmem:[%s1 + $0x68] sm:$0xff]
  %v67 = vld [vmem:[%s1 + $0x70] sm:$0xff]
  %v68 = vld [vmem:[%s1 + $0x78] sm:$0xff]
  %v69 = vld [vmem:[%s1 + $0x80] sm:$0xff]
  %v70 = vld [vmem:[%s1 + $0x88] sm:$0xff]
  %v71 = vld [vmem:[%s1 + $0x90] sm:$0xff]
  %v72 = vld [vmem:[%s1 + $0x98] sm:$0xff]
  %v73 = vld [vmem:[%s1 + $0xa0] sm:$0xff]
  %v74 = vld [vmem:[%s1 + $0xa8] sm:$0xff]
  %v75 = vld [vmem:[%s1 + $0xb0] sm:$0xff]
  %v76 = vld [vmem:[%s1 + $0xb8] sm:$0xff]
  %v77 = vld [vmem:[%s1 + $0xc0] sm:$0xff]
  %v78 = vld [vmem:[%s1 + $0xc8] sm:$0xff]
  %v79 = vld [vmem:[%s1 + $0xd0] sm:$0xff]
  %v80 = vld [vmem:[%s1 + $0xd8] sm:$0xff]
  %v81 = vld [vmem:[%s1 + $0xe0] sm:$0xff]
  %v82 = vld [vmem:[%s1 + $0xe8] sm:$0xff]
  %v83 = vld [vmem:[%s1 + $0xf0] sm:$0xff]
  %v84 = vld [vmem:[%s1 + $0xf8] sm:$0xff]
  %v85 = vld [vmem:[%s1 + $0x100] sm:$0xff]
  %v86 = vld [vmem:[%s1 + $0x108] sm:$0xff]
  %v87 = vld [vmem:[%s1 + $0x110] sm:$0xff]
  %v88 = vld [vmem:[%s1 + $0x118] sm:$0xff]
  %v89 = vld [vmem:[%s1 + $0x120] sm:$0xff]
  %v90 = vld [vmem:[%s1 + $0x128] sm:$0xff]
  %v91 = vld [vmem:[%s1 + $0x130] sm:$0xff]
  %v92 = vld [vmem:[%s1 + $0x138] sm:$0xff]
  %v93 = vld [vmem:[%s1 + $0x140] sm:$0xff]
  %v94 = vld [vmem:[%s1 + $0x148] sm:$0xff]
  %v95 = vld [vmem:[%s1 + $0x150] sm:$0xff]
  %v96 = vld [vmem:[%s1 + $0x158] sm:$0xff]
  %v97 = vld [vmem:[%s1 + $0x160] sm:$0xff]
  %v98 = vld [vmem:[%s1 + $0x168] sm:$0xff]
  %v99 = vld [vmem:[%s1 + $0x170] sm:$0xff]
  %v100 = vld [vmem:[%s1 + $0x178] sm:$0xff]
  %v101 = vld [vmem:[%s1 + $0x180] sm:$0xff]
  %v102 = vld [vmem:[%s1 + $0x188] sm:$0xff]
  %v103 = vld [vmem:[%s1 + $0x190] sm:$0xff]
  %v104 = vld [vmem:[%s1 + $0x198] sm:$0xff]
  %v105 = vld [vmem:[%s1 + $0x1a0] sm:$0xff]
  %v106 = vld [vmem:[%s1 + $0x1a8] sm:$0xff]
  %v107 = vld [vmem:[%s1 + $0x1b0] sm:$0xff]
  %v108 = vld [vmem:[%s1 + $0x1b8] sm:$0xff]
  %v109 = vld [vmem:[%s1 + $0x1c0] sm:$0xff]
  %v110 = vld [vmem:[%s1 + $0x1c8] sm:$0xff]
  %v111 = vld [vmem:[%s1 + $0x1d0] sm:$0xff]
  %v112 = vld [vmem:[%s1 + $0x1d8] sm:$0xff]
  %v113 = vld [vmem:[%s1 + $0x1e0] sm:$0xff]
  %v114 = vld [vmem:[%s1 + $0x1e8] sm:$0xff]
  %v115 = vld [vmem:[%s1 + $0x1f0] sm:$0xff]
  %v116 = vld [vmem:[%s1 + $0x1f8] sm:$0xff]
  %v117 = vld [vmem:[%s1 + $0x200] sm:$0xff]
  %v118 = vld [vmem:[%s1 + $0x208] sm:$0xff]
  %v119 = vld [vmem:[%s1 + $0x210] sm:$0xff]
  %v120 = vld [vmem:[%s1 + $0x218] sm:$0xff]
  %v121 = vld [vmem:[%s1 + $0x220] sm:$0xff]
  %v122 = vld [vmem:[%s1 + $0x228] sm:$0xff]
  %v123 = vld [vmem:[%s1 + $0x230] sm:$0xff]
  %v124 = vld [vmem:[%s1 + $0x238] sm:$0xff]
  %v125 = vld [vmem:[%s1 + $0x240] sm:$0xff]
  %v126 = vld [vmem:[%s1 + $0x248] sm:$0xff]
  %v127 = vld [vmem:[%s1 + $0x250] sm:$0xff]
  %v128 = vld [vmem:[%s1 + $0x258] sm:$0xff]
  %v129 = vld [vmem:[%s1 + $0x260] sm:$0xff]
  %v130 = vld [vmem:[%s1 + $0x268] sm:$0xff]
  %v131 = vld [vmem:[%s1 + $0x270] sm:$0xff]
  %v132 = vld [vmem:[%s1 + $0x278] sm:$0xff]
  %v133 = vld [vmem:[%s1 + $0x280] sm:$0xff]
  %v134 = vld [vmem:[%s1 + $0x288] sm:$0xff]
  %v135 = vld [vmem:[%s1 + $0x290] sm:$0xff]
  %v136 = vld [vmem:[%s1 + $0x298] sm:$0xff]
  %138 = vset.pattern.permute.xlu0 0
  %139 = vperm.xlu0 %138, %v11
  %v140 = vpop.permute.xlu0 %139
  %143 = vset.pattern.permute.xlu0 0
  %144 = vperm.xlu0 %143, %v12
  %v145 = vpop.permute.xlu0 %144
  %148 = vset.pattern.permute.xlu0 0
  %149 = vperm.xlu0 %148, %v13
  %v150 = vpop.permute.xlu0 %149
  %153 = vset.pattern.permute.xlu0 0
  %154 = vperm.xlu0 %153, %v14
  %v155 = vpop.permute.xlu0 %154
  %158 = vset.pattern.permute.xlu0 0
  %159 = vperm.xlu0 %158, %v15
  %v160 = vpop.permute.xlu0 %159
  %163 = vset.pattern.permute.xlu0 0
  %164 = vperm.xlu0 %163, %v16
  %v165 = vpop.permute.xlu0 %164
  %168 = vset.pattern.permute.xlu0 0
  %169 = vperm.xlu0 %168, %v17
  %v170 = vpop.permute.xlu0 %169
  %173 = vset.pattern.permute.xlu0 0
  %174 = vperm.xlu0 %173, %v18
  %v175 = vpop.permute.xlu0 %174
  %178 = vset.pattern.permute.xlu0 0
  %179 = vperm.xlu0 %178, %v19
  %v180 = vpop.permute.xlu0 %179
  %183 = vset.pattern.permute.xlu0 0
  %184 = vperm.xlu0 %183, %v20
  %v185 = vpop.permute.xlu0 %184
  %188 = vset.pattern.permute.xlu0 0
  %189 = vperm.xlu0 %188, %v21
  %v190 = vpop.permute.xlu0 %189
  %193 = vset.pattern.permute.xlu0 0
  %194 = vperm.xlu0 %193, %v22
  %v195 = vpop.permute.xlu0 %194
  %198 = vset.pattern.permute.xlu0 0
  %199 = vperm.xlu0 %198, %v23
  %v200 = vpop.permute.xlu0 %199
  %203 = vset.pattern.permute.xlu0 0
  %204 = vperm.xlu0 %203, %v24
  %v205 = vpop.permute.xlu0 %204
  %208 = vset.pattern.permute.xlu0 0
  %209 = vperm.xlu0 %208, %v25
  %v210 = vpop.permute.xlu0 %209
  %213 = vset.pattern.permute.xlu0 0
  %214 = vperm.xlu0 %213, %v26
  %v215 = vpop.permute.xlu0 %214
  %218 = vset.pattern.permute.xlu0 0
  %219 = vperm.xlu0 %218, %v27
  %v220 = vpop.permute.xlu0 %219
  %223 = vset.pattern.permute.xlu0 0
  %224 = vperm.xlu0 %223, %v28
  %v225 = vpop.permute.xlu0 %224
  %228 = vset.pattern.permute.xlu0 0
  %229 = vperm.xlu0 %228, %v29
  %v230 = vpop.permute.xlu0 %229
  %233 = vset.pattern.permute.xlu0 0
  %234 = vperm.xlu0 %233, %v30
  %v235 = vpop.permute.xlu0 %234
  %238 = vset.pattern.permute.xlu0 0
  %239 = vperm.xlu0 %238, %v31
  %v240 = vpop.permute.xlu0 %239
  %243 = vset.pattern.permute.xlu0 0
  %244 = vperm.xlu0 %243, %v32
  %v245 = vpop.permute.xlu0 %244
  %248 = vset.pattern.permute.xlu0 0
  %249 = vperm.xlu0 %248, %v33
  %v250 = vpop.permute.xlu0 %249
  %253 = vset.pattern.permute.xlu0 0
  %254 = vperm.xlu0 %253, %v34
  %v255 = vpop.permute.xlu0 %254
  %258 = vset.pattern.permute.xlu0 0
  %259 = vperm.xlu0 %258, %v35
  %v260 = vpop.permute.xlu0 %259
  %263 = vset.pattern.permute.xlu0 0
  %264 = vperm.xlu0 %263, %v36
  %v265 = vpop.permute.xlu0 %264
  %268 = vset.pattern.permute.xlu0 0
  %269 = vperm.xlu0 %268, %v37
  %v270 = vpop.permute.xlu0 %269
  %273 = vset.pattern.permute.xlu0 0
  %274 = vperm.xlu0 %273, %v38
  %v275 = vpop.permute.xlu0 %274
  %278 = vset.pattern.permute.xlu0 0
  %279 = vperm.xlu0 %278, %v39
  %v280 = vpop.permute.xlu0 %279
  %283 = vset.pattern.permute.xlu0 0
  %284 = vperm.xlu0 %283, %v40
  %v285 = vpop.permute.xlu0 %284
  %288 = vset.pattern.permute.xlu0 0
  %289 = vperm.xlu0 %288, %v41
  %v290 = vpop.permute.xlu0 %289
  %293 = vset.pattern.permute.xlu0 0
  %294 = vperm.xlu0 %293, %v42
  %v295 = vpop.permute.xlu0 %294
  %298 = vset.pattern.permute.xlu0 0
  %299 = vperm.xlu0 %298, %v43
  %v300 = vpop.permute.xlu0 %299
  %303 = vset.pattern.permute.xlu0 0
  %304 = vperm.xlu0 %303, %v44
  %v305 = vpop.permute.xlu0 %304
  %308 = vset.pattern.permute.xlu0 0
  %309 = vperm.xlu0 %308, %v45
  %v310 = vpop.permute.xlu0 %309
  %313 = vset.pattern.permute.xlu0 0
  %314 = vperm.xlu0 %313, %v46
  %v315 = vpop.permute.xlu0 %314
  %318 = vset.pattern.permute.xlu0 0
  %319 = vperm.xlu0 %318, %v47
  %v320 = vpop.permute.xlu0 %319
  %323 = vset.pattern.permute.xlu0 0
  %324 = vperm.xlu0 %323, %v48
  %v325 = vpop.permute.xlu0 %324
  %328 = vset.pattern.permute.xlu0 0
  %329 = vperm.xlu0 %328, %v49
  %v330 = vpop.permute.xlu0 %329
  %333 = vset.pattern.permute.xlu0 0
  %334 = vperm.xlu0 %333, %v50
  %v335 = vpop.permute.xlu0 %334
  %338 = vset.pattern.permute.xlu0 0
  %339 = vperm.xlu0 %338, %v51
  %v340 = vpop.permute.xlu0 %339
  %343 = vset.pattern.permute.xlu0 0
  %344 = vperm.xlu0 %343, %v52
  %v345 = vpop.permute.xlu0 %344
  %v347 = vmul.f32 %v140, %v53
  %v348 = vmul.f32 %v140, %v54
  %v349 = vmul.f32 %v145, %v55
  %v350 = vmul.f32 %v145, %v56
  %v351 = vmul.f32 %v150, %v57
  %v352 = vmul.f32 %v150, %v58
  %v353 = vmul.f32 %v155, %v59
  %v354 = vmul.f32 %v155, %v60
  %v355 = vmul.f32 %v160, %v61
  %v356 = vmul.f32 %v160, %v62
  %v357 = vmul.f32 %v165, %v63
  %v358 = vmul.f32 %v165, %v64
  %v359 = vmul.f32 %v170, %v65
  %v360 = vmul.f32 %v170, %v66
  %v361 = vmul.f32 %v175, %v67
  %v362 = vmul.f32 %v175, %v68
  %v363 = vmul.f32 %v180, %v69
  %v364 = vmul.f32 %v180, %v70
  %v365 = vmul.f32 %v185, %v71
  %v366 = vmul.f32 %v185, %v72
  %v367 = vmul.f32 %v190, %v73
  %v368 = vmul.f32 %v190, %v74
  %v369 = vmul.f32 %v195, %v75
  %v370 = vmul.f32 %v195, %v76
  %v371 = vmul.f32 %v200, %v77
  %v372 = vmul.f32 %v200, %v78
  %v373 = vmul.f32 %v205, %v79
  %v374 = vmul.f32 %v205, %v80
  %v375 = vmul.f32 %v210, %v81
  %v376 = vmul.f32 %v210, %v82
  %v377 = vmul.f32 %v215, %v83
  %v378 = vmul.f32 %v215, %v84
  %v379 = vmul.f32 %v220, %v85
  %v380 = vmul.f32 %v220, %v86
  %v381 = vmul.f32 %v225, %v87
  %v382 = vmul.f32 %v225, %v88
  %v383 = vmul.f32 %v230, %v89
  %v384 = vmul.f32 %v230, %v90
  %v385 = vmul.f32 %v235, %v91
  %v386 = vmul.f32 %v235, %v92
  %v387 = vmul.f32 %v240, %v93
  %v388 = vmul.f32 %v240, %v94
  %v389 = vmul.f32 %v245, %v95
  %v390 = vmul.f32 %v245, %v96
  %v391 = vmul.f32 %v250, %v97
  %v392 = vmul.f32 %v250, %v98
  %v393 = vmul.f32 %v255, %v99
  %v394 = vmul.f32 %v255, %v100
  %v395 = vmul.f32 %v260, %v101
  %v396 = vmul.f32 %v260, %v102
  %v397 = vmul.f32 %v265, %v103
  %v398 = vmul.f32 %v265, %v104
  %v399 = vmul.f32 %v270, %v105
  %v400 = vmul.f32 %v270, %v106
  %v401 = vmul.f32 %v275, %v107
  %v402 = vmul.f32 %v275, %v108
  %v403 = vmul.f32 %v280, %v109
  %v404 = vmul.f32 %v280, %v110
  %v405 = vmul.f32 %v285, %v111
  %v406 = vmul.f32 %v285, %v112
  %v407 = vmul.f32 %v290, %v113
  %v408 = vmul.f32 %v290, %v114
  %v409 = vmul.f32 %v295, %v115
  %v410 = vmul.f32 %v295, %v116
  %v411 = vmul.f32 %v300, %v117
  %v412 = vmul.f32 %v300, %v118
  %v413 = vmul.f32 %v305, %v119
  %v414 = vmul.f32 %v305, %v120
  %v415 = vmul.f32 %v310, %v121
  %v416 = vmul.f32 %v310, %v122
  %v417 = vmul.f32 %v315, %v123
  %v418 = vmul.f32 %v315, %v124
  %v419 = vmul.f32 %v320, %v125
  %v420 = vmul.f32 %v320, %v126
  %v421 = vmul.f32 %v325, %v127
  %v422 = vmul.f32 %v325, %v128
  %v423 = vmul.f32 %v330, %v129
  %v424 = vmul.f32 %v330, %v130
  %v425 = vmul.f32 %v335, %v131
  %v426 = vmul.f32 %v335, %v132
  %v427 = vmul.f32 %v340, %v133
  %v428 = vmul.f32 %v340, %v134
  %v429 = vmul.f32 %v345, %v135
  %v430 = vmul.f32 %v345, %v136
  %431 = vst [vmem:[%s2] sm:$0xff] %v347
  %vm432 = vcmask 556032
  %433 = vst.msk [vmem:[%s2 + $0x8] sm:$0xff] %vm432, %v348
  %434 = vst [vmem:[%s2 + $0x10] sm:$0xff] %v349
  %435 = vst.msk [vmem:[%s2 + $0x18] sm:$0xff] %vm432, %v350
  %436 = vst [vmem:[%s2 + $0x20] sm:$0xff] %v351
  %437 = vst.msk [vmem:[%s2 + $0x28] sm:$0xff] %vm432, %v352
  %438 = vst [vmem:[%s2 + $0x30] sm:$0xff] %v353
  %439 = vst.msk [vmem:[%s2 + $0x38] sm:$0xff] %vm432, %v354
  %440 = vst [vmem:[%s2 + $0x40] sm:$0xff] %v355
  %441 = vst.msk [vmem:[%s2 + $0x48] sm:$0xff] %vm432, %v356
  %442 = vst [vmem:[%s2 + $0x50] sm:$0xff] %v357
  %443 = vst.msk [vmem:[%s2 + $0x58] sm:$0xff] %vm432, %v358
  %444 = vst [vmem:[%s2 + $0x60] sm:$0xff] %v359
  %445 = vst.msk [vmem:[%s2 + $0x68] sm:$0xff] %vm432, %v360
  %446 = vst [vmem:[%s2 + $0x70] sm:$0xff] %v361
  %447 = vst.msk [vmem:[%s2 + $0x78] sm:$0xff] %vm432, %v362
  %448 = vst [vmem:[%s2 + $0x80] sm:$0xff] %v363
  %449 = vst.msk [vmem:[%s2 + $0x88] sm:$0xff] %vm432, %v364
  %450 = vst [vmem:[%s2 + $0x90] sm:$0xff] %v365
  %451 = vst.msk [vmem:[%s2 + $0x98] sm:$0xff] %vm432, %v366
  %452 = vst [vmem:[%s2 + $0xa0] sm:$0xff] %v367
  %453 = vst.msk [vmem:[%s2 + $0xa8] sm:$0xff] %vm432, %v368
  %454 = vst [vmem:[%s2 + $0xb0] sm:$0xff] %v369
  %455 = vst.msk [vmem:[%s2 + $0xb8] sm:$0xff] %vm432, %v370
  %456 = vst [vmem:[%s2 + $0xc0] sm:$0xff] %v371
  %457 = vst.msk [vmem:[%s2 + $0xc8] sm:$0xff] %vm432, %v372
  %458 = vst [vmem:[%s2 + $0xd0] sm:$0xff] %v373
  %459 = vst.msk [vmem:[%s2 + $0xd8] sm:$0xff] %vm432, %v374
  %460 = vst [vmem:[%s2 + $0xe0] sm:$0xff] %v375
  %461 = vst.msk [vmem:[%s2 + $0xe8] sm:$0xff] %vm432, %v376
  %462 = vst [vmem:[%s2 + $0xf0] sm:$0xff] %v377
  %463 = vst.msk [vmem:[%s2 + $0xf8] sm:$0xff] %vm432, %v378
  %464 = vst [vmem:[%s2 + $0x100] sm:$0xff] %v379
  %465 = vst.msk [vmem:[%s2 + $0x108] sm:$0xff] %vm432, %v380
  %466 = vst [vmem:[%s2 + $0x110] sm:$0xff] %v381
  %467 = vst.msk [vmem:[%s2 + $0x118] sm:$0xff] %vm432, %v382
  %468 = vst [vmem:[%s2 + $0x120] sm:$0xff] %v383
  %469 = vst.msk [vmem:[%s2 + $0x128] sm:$0xff] %vm432, %v384
  %470 = vst [vmem:[%s2 + $0x130] sm:$0xff] %v385
  %471 = vst.msk [vmem:[%s2 + $0x138] sm:$0xff] %vm432, %v386
  %472 = vst [vmem:[%s2 + $0x140] sm:$0xff] %v387
  %473 = vst.msk [vmem:[%s2 + $0x148] sm:$0xff] %vm432, %v388
  %474 = vst [vmem:[%s2 + $0x150] sm:$0xff] %v389
  %475 = vst.msk [vmem:[%s2 + $0x158] sm:$0xff] %vm432, %v390
  %476 = vst [vmem:[%s2 + $0x160] sm:$0xff] %v391
  %477 = vst.msk [vmem:[%s2 + $0x168] sm:$0xff] %vm432, %v392
  %478 = vst [vmem:[%s2 + $0x170] sm:$0xff] %v393
  %479 = vst.msk [vmem:[%s2 + $0x178] sm:$0xff] %vm432, %v394
  %480 = vst [vmem:[%s2 + $0x180] sm:$0xff] %v395
  %481 = vst.msk [vmem:[%s2 + $0x188] sm:$0xff] %vm432, %v396
  %482 = vst [vmem:[%s2 + $0x190] sm:$0xff] %v397
  %483 = vst.msk [vmem:[%s2 + $0x198] sm:$0xff] %vm432, %v398
  %484 = vst [vmem:[%s2 + $0x1a0] sm:$0xff] %v399
  %485 = vst.msk [vmem:[%s2 + $0x1a8] sm:$0xff] %vm432, %v400
  %486 = vst [vmem:[%s2 + $0x1b0] sm:$0xff] %v401
  %487 = vst.msk [vmem:[%s2 + $0x1b8] sm:$0xff] %vm432, %v402
  %488 = vst [vmem:[%s2 + $0x1c0] sm:$0xff] %v403
  %489 = vst.msk [vmem:[%s2 + $0x1c8] sm:$0xff] %vm432, %v404
  %490 = vst [vmem:[%s2 + $0x1d0] sm:$0xff] %v405
  %491 = vst.msk [vmem:[%s2 + $0x1d8] sm:$0xff] %vm432, %v406
  %492 = vst [vmem:[%s2 + $0x1e0] sm:$0xff] %v407
  %493 = vst.msk [vmem:[%s2 + $0x1e8] sm:$0xff] %vm432, %v408
  %494 = vst [vmem:[%s2 + $0x1f0] sm:$0xff] %v409
  %495 = vst.msk [vmem:[%s2 + $0x1f8] sm:$0xff] %vm432, %v410
  %496 = vst [vmem:[%s2 + $0x200] sm:$0xff] %v411
  %497 = vst.msk [vmem:[%s2 + $0x208] sm:$0xff] %vm432, %v412
  %498 = vst [vmem:[%s2 + $0x210] sm:$0xff] %v413
  %499 = vst.msk [vmem:[%s2 + $0x218] sm:$0xff] %vm432, %v414
  %500 = vst [vmem:[%s2 + $0x220] sm:$0xff] %v415
  %501 = vst.msk [vmem:[%s2 + $0x228] sm:$0xff] %vm432, %v416
  %502 = vst [vmem:[%s2 + $0x230] sm:$0xff] %v417
  %503 = vst.msk [vmem:[%s2 + $0x238] sm:$0xff] %vm432, %v418
  %504 = vst [vmem:[%s2 + $0x240] sm:$0xff] %v419
  %505 = vst.msk [vmem:[%s2 + $0x248] sm:$0xff] %vm432, %v420
  %506 = vst [vmem:[%s2 + $0x250] sm:$0xff] %v421
  %507 = vst.msk [vmem:[%s2 + $0x258] sm:$0xff] %vm432, %v422
  %508 = vst [vmem:[%s2 + $0x260] sm:$0xff] %v423
  %509 = vst.msk [vmem:[%s2 + $0x268] sm:$0xff] %vm432, %v424
  %510 = vst [vmem:[%s2 + $0x270] sm:$0xff] %v425
  %511 = vst.msk [vmem:[%s2 + $0x278] sm:$0xff] %vm432, %v426
  %512 = vst [vmem:[%s2 + $0x280] sm:$0xff] %v427
  %513 = vst.msk [vmem:[%s2 + $0x288] sm:$0xff] %vm432, %v428
  %514 = vst [vmem:[%s2 + $0x290] sm:$0xff] %v429
  %515 = vst.msk [vmem:[%s2 + $0x298] sm:$0xff] %vm432, %v430
  // Predicated region
  $region10: #{tpu_custom_call.1} parent=0 // pred_check
    _
  $region11: #{tpu_custom_call.1} parent=0 // pred_check_branch
    %517 = sbr.rel (0) target = $region13
  $region12: #{tpu_custom_call.1} parent=0 // pred_region
    _
  $region13: #{tpu_custom_call.1} parent=0 // pred_fallthru
    _
  // Predicated region
  $region14: #{tpu_custom_call.1} parent=0 // pred_check
    _
  $region15: #{tpu_custom_call.1} parent=0 // pred_check_branch
    %519 = sbr.rel (0) target = $region17
  $region16: #{tpu_custom_call.1} parent=0 // pred_region
    _
  $region17: #{tpu_custom_call.1} parent=0 // pred_fallthru
    _

</llo_original>
